<compile_context>
chip_gen: v7x
topology: tpu7x:2x2x1
jax: 0.10.0
libtpu: 0.0.40
codegen_flags: <defaults>
</compile_context>

<pallas_src>
import functools

import numpy as np

import jax
import jax.numpy as jnp
from jax.experimental import pallas as pl
from jax.experimental.pallas import tpu as pltpu


def _selection_tensor(col, ksize, n_pool):
    """Trace-time constant E[k, i, j]: 1 where W[i, j] should equal w[k].

    Columns 0..n_pool-1 of W select conv outputs at even positions 2j,
    columns n_pool..2*n_pool-1 select odd positions 2j+1, so that
    (x @ W)[:, j]          == conv(x)[:, 2j]      (no bias)
    (x @ W)[:, n_pool + j] == conv(x)[:, 2j + 1]  (no bias)
    """
    E = np.zeros((ksize, col, 2 * n_pool), np.float32)
    for j in range(n_pool):
        for k in range(ksize):
            E[k, 2 * j + k, j] = 1.0                   # even taps
            E[k, 2 * j + 1 + k, n_pool + j] = 1.0      # odd taps
    return E


def cnn_fused_kernel(x_ref, w_ref, b_ref, out_ref, *, n_pool):
    """relu(maxpool2(conv1d(x) + b)) for a block of rows, as one matmul.

    x_ref   : (TR, col)        f32 VMEM  -- a tile of stacked sample rows
    w_ref   : (col, 2*n_pool)  f32 VMEM  -- fused conv-tap + pool-select matrix
    b_ref   : (1,)             f32 SMEM  -- conv1 bias
    out_ref : (TR, n_pool)     f32 VMEM  -- relu(maxpool(conv(x) + b))
    """
    # Hoist the SMEM scalar read so it overlaps with MXU latency.
    bias = b_ref[0]

    # Conv taps + stride-2 pool selection fused into one MXU push.
    # precision=HIGHEST: keep full f32 accuracy on bf16-native MXUs.
    y = jnp.dot(
        x_ref[...], w_ref[...],
        preferred_element_type=jnp.float32,
        precision=jax.lax.Precision.HIGHEST,
    )  # (TR, 2*n_pool): [even conv outputs | odd conv outputs]

    # max_pool1d(2) = max of the two contiguous lane halves; bias commutes
    # exactly with the max (uniform add), ReLU fused.
    pooled = jnp.maximum(y[:, :n_pool], y[:, n_pool:]) + bias
    out_ref[...] = jnp.maximum(pooled, 0.0)


def basic_cnn_forward_batched(xs, conv_w, conv_b, *, samples_per_block=None):
    """Batched Pallas implementation: xs is (B, row, col) -> (B, 20, 4)."""
    B, row, col = xs.shape
    k = conv_w.shape[-1]
    l_out = col - k + 1            # conv1 output length
    n_pool = l_out // 2            # max_pool1d(kernel=2) output length
    assert row * n_pool == 80, "forward() hard-codes view(20, 4) => need 80 elems"

    if samples_per_block is None:
        samples_per_block = next(g for g in (8, 4, 2, 1) if B % g == 0)
    assert B % samples_per_block == 0
    tr = samples_per_block * row                 # rows per grid step (multiple of 8)
    grid = (B * row // tr,)

    # Free reshape (leading-dim merge): all samples stacked along sublanes.
    xs_flat = xs.reshape(B * row, col).astype(jnp.float32)

    # Fused weight matrix built once in the wrapper (structure is a numpy
    # constant; only a tiny contraction with w happens at runtime).
    w = conv_w.reshape(k).astype(jnp.float32)
    E = _selection_tensor(col, k, n_pool)        # (k, col, 2*n_pool) constant
    W = jnp.tensordot(w, E, axes=1)              # (col, 2*n_pool)
    b = conv_b.reshape(1).astype(jnp.float32)

    pooled = pl.pallas_call(
        functools.partial(cnn_fused_kernel, n_pool=n_pool),
        out_shape=jax.ShapeDtypeStruct((B * row, n_pool), jnp.float32),
        grid=grid,
        in_specs=[
            pl.BlockSpec((tr, col), lambda i: (i, 0)),            # x row tile
            pl.BlockSpec((col, 2 * n_pool), lambda i: (0, 0)),    # W, resident
            pl.BlockSpec(memory_space=pltpu.MemorySpace.SMEM),    # bias scalar
        ],
        out_specs=pl.BlockSpec((tr, n_pool), lambda i: (i, 0)),
        compiler_params=pltpu.CompilerParams(
            dimension_semantics=("parallel",),   # v7x: both TCs split the batch
        ),
    )(xs_flat, W, b)

    # forward() hard-codes view(20, 4); one batched relayout for the whole
    # batch (the second F.relu is idempotent after the in-kernel ReLU).
    # TODO(synk): in a real pipeline, keep (B*row, n_pool) and fuse this
    # relayout into the downstream consumer.
    return pooled.reshape(B, 20, 4)


def basic_cnn_forward(x, conv_w, conv_b):
    """Single-sample path matching the PyTorch module exactly: (row, col) -> (20, 4)."""
    return basic_cnn_forward_batched(x[None], conv_w, conv_b)[0]


def reference_forward(x, conv_w, conv_b):
    """Pure-JAX reference mirroring the PyTorch forward (including both ReLUs)."""
    row, col = x.shape
    k = conv_w.shape[-1]
    l_out = col - k + 1
    w = conv_w.reshape(k)
    conv = jnp.stack(
        [jnp.sum(x[:, t:t + k] * w, axis=-1) for t in range(l_out)], axis=-1
    ) + conv_b.reshape(1)
    pooled = jnp.max(conv[:, : 2 * (l_out // 2)].reshape(row, l_out // 2, 2), axis=-1)
    h = jnp.maximum(pooled, 0.0)
    out = h.reshape(20, 4)
    return jnp.maximum(out, 0.0)


if __name__ == "__main__":
    # Per-sample shapes consistent with forward(): row * ((col - 9) // 2) == 80.
    ROW, COL, KSIZE = 8, 29, 10      # conv len 20 -> pool len 10 -> 8*10 = 80 = 20*4
    BATCH = 16                       # many forward() calls amortized into one launch

    key = jax.random.PRNGKey(0)
    k_x, k_w, k_b = jax.random.split(key, 3)

    xs = jax.random.normal(k_x, (BATCH, ROW, COL), dtype=jnp.float32)

    # Deterministic Conv1d(1, 1, 10) init (PyTorch default: U(-sqrt(1/K), sqrt(1/K))).
    bound = float(1.0 / np.sqrt(KSIZE))
    conv_w = jax.random.uniform(k_w, (1, 1, KSIZE), jnp.float32, -bound, bound)
    conv_b = jax.random.uniform(k_b, (1,), jnp.float32, -bound, bound)

    # Batched path: one pallas_call for all samples.
    out = jax.jit(basic_cnn_forward_batched)(xs, conv_w, conv_b)
    out = jax.block_until_ready(out)
    assert out.shape == (BATCH, 20, 4) and out.dtype == jnp.float32
    for i in range(BATCH):
        ref = reference_forward(xs[i], conv_w, conv_b)
        assert jnp.allclose(out[i], ref, atol=1e-5, rtol=1e-5), f"mismatch sample {i}"

    # Single-sample path: exact module signature (row, col) -> (20, 4).
    out1 = jax.jit(basic_cnn_forward)(xs[0], conv_w, conv_b)
    out1 = jax.block_until_ready(out1)
    assert out1.shape == (20, 4)
    assert jnp.allclose(out1, reference_forward(xs[0], conv_w, conv_b),
                        atol=1e-5, rtol=1e-5), "mismatch vs reference (single)"

    print("KERNEL_OK")
</pallas_src>

<mosaic_0001>
module attributes {stable_mosaic.version = 11 : i64} {
  func.func @cnn_fused_kernel(%arg0: i32, %arg1: memref<64x29xf32, #tpu.memory_space<vmem>>, %arg2: memref<29x20xf32, #tpu.memory_space<vmem>>, %arg3: memref<1xf32, #tpu.memory_space<smem>>, %arg4: memref<64x10xf32, #tpu.memory_space<vmem>>) attributes {dimension_semantics = [#tpu.dimension_semantics<parallel>], iteration_bounds = array<i64: 2>, scalar_prefetch = 0 : i64, scratch_operands = 0 : i64, tpu.core_type = #tpu.core_type<tc>, window_params = [{transform_indices = @transform_0, window_bounds = array<i64: 64, 29>}, {pipeline_mode = #tpu.pipeline_mode<synchronous>, transform_indices = @transform_1, window_bounds = array<i64: 29, 20>}, {transform_indices = @transform_2, window_bounds = array<i64: 1>}, {transform_indices = @transform_3, window_bounds = array<i64: 64, 10>}]} {
    %c0 = arith.constant 0 : index
    %0 = memref.load %arg3[%c0] : memref<1xf32, #tpu.memory_space<smem>>
    %c0_0 = arith.constant 0 : index
    %c0_1 = arith.constant 0 : index
    %1 = vector.load %arg1[%c0_0, %c0_1] : memref<64x29xf32, #tpu.memory_space<vmem>>, vector<64x29xf32>
    %c0_2 = arith.constant 0 : index
    %c0_3 = arith.constant 0 : index
    %2 = vector.load %arg2[%c0_2, %c0_3] : memref<29x20xf32, #tpu.memory_space<vmem>>, vector<29x20xf32>
    %cst = arith.constant dense<0.000000e+00> : vector<64x20xf32>
    %3 = tpu.matmul %1, %2, %cst {dimension_numbers = #tpu.dot_dimension_numbers<[1], [0], [0], [1], [0, 0, 1, 1], [], []>, precision = #tpu.contract_precision<fp32>} : vector<64x29xf32>, vector<29x20xf32>, vector<64x20xf32> -> vector<64x20xf32>
    %4 = vector.extract_strided_slice %3 {offsets = [0, 0], sizes = [64, 10], strides = [1, 1]} : vector<64x20xf32> to vector<64x10xf32>
    %5 = vector.extract_strided_slice %3 {offsets = [0, 10], sizes = [64, 10], strides = [1, 1]} : vector<64x20xf32> to vector<64x10xf32>
    %6 = arith.maximumf %4, %5 : vector<64x10xf32>
    %7 = vector.broadcast %0 : f32 to vector<64x10xf32>
    %8 = arith.addf %6, %7 : vector<64x10xf32>
    %cst_4 = arith.constant 0.000000e+00 : f32
    %9 = vector.broadcast %cst_4 : f32 to vector<64x10xf32>
    %10 = arith.maximumf %8, %9 : vector<64x10xf32>
    %c0_5 = arith.constant 0 : index
    %c0_6 = arith.constant 0 : index
    %11 = vector.load %arg4[%c0_5, %c0_6] : memref<64x10xf32, #tpu.memory_space<vmem>>, vector<64x10xf32>
    tpu.vector_store %arg4[%c0_5, %c0_6], %10 {strides = array<i32>} : memref<64x10xf32, #tpu.memory_space<vmem>>, vector<64x10xf32>,
    return
  }
  func.func @transform_0(%arg0: i32) -> (i32, i32) {
    %c0_i32 = arith.constant 0 : i32
    %c0_i32_0 = arith.constant 0 : i32
    return %arg0, %c0_i32 : i32, i32
  }
  func.func @transform_1(%arg0: i32) -> (i32, i32) {
    %c0_i32 = arith.constant 0 : i32
    %c0_i32_0 = arith.constant 0 : i32
    %c0_i32_1 = arith.constant 0 : i32
    return %c0_i32, %c0_i32_0 : i32, i32
  }
  func.func @transform_2(%arg0: i32) -> i32 {
    %c0_i32 = arith.constant 0 : i32
    %c0_i32_0 = arith.constant 0 : i32
    return %c0_i32 : i32
  }
  func.func @transform_3(%arg0: i32) -> (i32, i32) {
    %c0_i32 = arith.constant 0 : i32
    %c0_i32_0 = arith.constant 0 : i32
    return %arg0, %c0_i32 : i32, i32
  }
}

</mosaic_0001>

<llo_original>
// kernel: basic_cnn_forward_batched.1
$region0: #{basic_cnn_forward_batched.1}
  #allocation0 [shape = 'u32[]', space=smem, size = 0x4, offset = 0x4, fixed_abs, tag = 'smem constant byte address 0x4 - core index']
  #allocation1 [shape = 'u32[144,128]{1,0:T(1,128)}', space=vmem, size = 0x12000, scoped, tag = 'internal scratch']
  #allocation2 [shape = 'f32[1]{0:T(128)S(6)}', space=smem, size = 0x200, scoped, tag = 'scoped memory for basic_cnn_forward_batched.1']
  %s0 = inlined_call_operand.vmem [shape: f32[128,29], index: 0, kind: input, shape index: {}]
  %s1 = inlined_call_operand.vmem [shape: f32[29,20], index: 1, kind: input, shape index: {}]
  %s2 = inlined_call_operand.<no memory space> [shape: f32[1], index: 2, kind: input, shape index: {}]
  %s3 = inlined_call_operand.vmem [shape: f32[128,10], index: 3, kind: output, shape index: {}]
  %s4 = sld [smem:[#allocation0]]
  $region45: #{basic_cnn_forward_batched.1} parent=0
    _
  %s6 = ssub.s32 1, %s4
  %s7 = scalar_select 0, %s6, %s4
  %8 = sst [smem:[#allocation2]] %s2
  loop: start=0, step=1, limit=4
  $region2: #{basic_cnn_forward_batched.1} parent=0 // loop_pre_header
    _
  $region3: #{basic_cnn_forward_batched.1} parent=0 // loop_header
    %s10 = sphi 0, %s14
    %p11 = scmp.ge.s32.totalorder %s10, 4
    %s20 = sphi 0, %s22
    %s23 = sphi 0, %s20
    %s24 = sphi 0, %s23
    %s40 = sphi 0, %s24
    %s44 = sphi 0, %s44
    %s46 = sphi 0, %s44
    %s47 = sphi 0, %s46
    %s61 = sphi 0, %s47
    %s65 = sphi 0, %s65
    %s67 = sphi 0, %s65
    %s68 = sphi 0, %s67
    %s82 = sphi 0, %s68
    %s88 = sphi 0, %s90
    %s91 = sphi 0, %s88
    %s92 = sphi 0, %s91
    %s108 = sphi 0, %s92
  $region4: #{basic_cnn_forward_batched.1} parent=0 // loop_header_branch
    %13 = sbr.rel (%p11) target = $region8
  $region5: #{basic_cnn_forward_batched.1} parent=0 // loop_body
    %s15 = ssub.s32 %s10, 1
    %s16 = ssub.s32 %s10, 2
    %s17 = sadd.s32 %s10, 1
    %s18 = ssub.s32 %s10, %s17
    %p19 = scmp.eq.s32.totalorder %s18, 0
    %s21 = sadd.s32 %s20, 1
    %s22 = scalar_select %p19, %s20, %s21
    %p25 = pneg %p19
    %p26 = scmp.eq.s32.totalorder %s10, 1
    %p27 = por %p25, %p26
    %p28 = scmp.ne.s32.totalorder %s20, %s23
    %p29 = scmp.eq.s32.totalorder %s10, 0
    %p30 = por %p28, %p29
    %p31 = scmp.ne.s32.totalorder %s20, %s23
    %p32 = scmp.eq.s32.totalorder %s15, 1
    %p33 = por %p31, %p32
    %p34 = scmp.ne.s32.totalorder %s23, %s24
    %p35 = scmp.eq.s32.totalorder %s15, 0
    %p36 = por %p34, %p35
    %p37 = scmp.ne.s32.totalorder %s23, %s24
    %p38 = scmp.eq.s32.totalorder %s16, 1
    %p39 = por %p37, %p38
    %p41 = scmp.ne.s32.totalorder %s24, %s40
    %p42 = scmp.eq.s32.totalorder %s16, 0
    %p43 = por %p41, %p42
    %s45 = sadd.s32 %s44, 1
    %p48 = scmp.eq.s32.totalorder %s10, 1
    %p49 = scmp.ne.s32.totalorder %s44, %s46
    %p50 = scmp.eq.s32.totalorder %s10, 0
    %p51 = por %p49, %p50
    %p52 = scmp.ne.s32.totalorder %s44, %s46
    %p53 = scmp.eq.s32.totalorder %s15, 1
    %p54 = por %p52, %p53
    %p55 = scmp.ne.s32.totalorder %s46, %s47
    %p56 = scmp.eq.s32.totalorder %s15, 0
    %p57 = por %p55, %p56
    %p58 = scmp.ne.s32.totalorder %s46, %s47
    %p59 = scmp.eq.s32.totalorder %s16, 1
    %p60 = por %p58, %p59
    %p62 = scmp.ne.s32.totalorder %s47, %s61
    %p63 = scmp.eq.s32.totalorder %s16, 0
    %p64 = por %p62, %p63
    %s66 = sadd.s32 %s65, 1
    %p69 = scmp.eq.s32.totalorder %s10, 1
    %p70 = scmp.ne.s32.totalorder %s65, %s67
    %p71 = scmp.eq.s32.totalorder %s10, 0
    %p72 = por %p70, %p71
    %p73 = scmp.ne.s32.totalorder %s65, %s67
    %p74 = scmp.eq.s32.totalorder %s15, 1
    %p75 = por %p73, %p74
    %p76 = scmp.ne.s32.totalorder %s67, %s68
    %p77 = scmp.eq.s32.totalorder %s15, 0
    %p78 = por %p76, %p77
    %p79 = scmp.ne.s32.totalorder %s67, %s68
    %p80 = scmp.eq.s32.totalorder %s16, 1
    %p81 = por %p79, %p80
    %p83 = scmp.ne.s32.totalorder %s68, %s82
    %p84 = scmp.eq.s32.totalorder %s16, 0
    %p85 = por %p83, %p84
    %s86 = ssub.s32 %s10, %s17
    %p87 = scmp.eq.s32.totalorder %s86, 0
    %s89 = sadd.s32 %s88, 1
    %s90 = scalar_select %p87, %s88, %s89
    %p93 = pneg %p87
    %p94 = scmp.eq.s32.totalorder %s10, 1
    %p95 = por %p93, %p94
    %p96 = scmp.ne.s32.totalorder %s88, %s91
    %p97 = scmp.eq.s32.totalorder %s10, 0
    %p98 = por %p96, %p97
    %p99 = scmp.ne.s32.totalorder %s88, %s91
    %p100 = scmp.eq.s32.totalorder %s15, 1
    %p101 = por %p99, %p100
    %p102 = scmp.ne.s32.totalorder %s91, %s92
    %p103 = scmp.eq.s32.totalorder %s15, 0
    %p104 = por %p102, %p103
    %p105 = scmp.ne.s32.totalorder %s91, %s92
    %p106 = scmp.eq.s32.totalorder %s16, 1
    %p107 = por %p105, %p106
    %p109 = scmp.ne.s32.totalorder %s92, %s108
    %p110 = scmp.eq.s32.totalorder %s16, 0
    %p111 = por %p109, %p110
    %p112 = scmp.le.s32.totalorder 1, %s10
    %p113 = scmp.lt.s32.totalorder %s10, 3
    %p114 = pnand %p112, %p113
    %p115 = pneg %p114
    // Predicated region
    $region9: #{basic_cnn_forward_batched.1} parent=5 // pred_check
      _
    $region10: #{basic_cnn_forward_batched.1} parent=5 // pred_check_branch
      %117 = sbr.rel (%p114) target = $region12
    $region11: #{basic_cnn_forward_batched.1} parent=5 // pred_region
      %s118 = ssub.s32 %s10, 1
      // Predicated region
      $region13: #{basic_cnn_forward_batched.1} parent=11 // pred_check
        %p119 = pneg %p57
      $region14: #{basic_cnn_forward_batched.1} parent=11 // pred_check_branch
        %121 = sbr.rel (%p119) target = $region16
      $region15: #{basic_cnn_forward_batched.1} parent=11 // pred_region
        _
      $region16: #{basic_cnn_forward_batched.1} parent=11 // pred_fallthru
        _
      // Predicated region
      $region17: #{basic_cnn_forward_batched.1} parent=11 // pred_check
        %p122 = pneg %p78
      $region18: #{basic_cnn_forward_batched.1} parent=11 // pred_check_branch
        %124 = sbr.rel (%p122) target = $region20
      $region19: #{basic_cnn_forward_batched.1} parent=11 // pred_region
        _
      $region20: #{basic_cnn_forward_batched.1} parent=11 // pred_fallthru
        _
    $region12: #{basic_cnn_forward_batched.1} parent=5 // pred_fallthru
      _
    %p125 = scmp.lt.s32.totalorder %s10, 2
    // Predicated region
    $region21: #{basic_cnn_forward_batched.1} parent=5 // pred_check
      %p126 = pneg %p125
    $region22: #{basic_cnn_forward_batched.1} parent=5 // pred_check_branch
      %128 = sbr.rel (%p126) target = $region24
    $region23: #{basic_cnn_forward_batched.1} parent=5 // pred_region
      // Predicated region
      $region25: #{basic_cnn_forward_batched.1} parent=23 // pred_check
        %p129 = pneg %p30
      $region26: #{basic_cnn_forward_batched.1} parent=23 // pred_check_branch
        %131 = sbr.rel (%p129) target = $region28
      $region27: #{basic_cnn_forward_batched.1} parent=23 // pred_region
        %s132 = smul.u32 8, %s10
        %p133 = scmp.lt.s32.totalorder %s132, 15
        %s134 = scalar_select %p133, %s132, 15
        %s135 = smul.addr %s134, 8
        %s136 = scalar_lea.vmem %s0, %s135
        %s137 = smul.u32 8, %s10
      $region28: #{basic_cnn_forward_batched.1} parent=23 // pred_fallthru
        _
    $region24: #{basic_cnn_forward_batched.1} parent=5 // pred_fallthru
      _
    %p138 = scmp.le.s32.totalorder 1, %s10
    %p139 = scmp.lt.s32.totalorder %s10, 3
    %p140 = pnand %p138, %p139
    %p141 = pneg %p140
    // Predicated region
    $region29: #{basic_cnn_forward_batched.1} parent=5 // pred_check
      _
    $region30: #{basic_cnn_forward_batched.1} parent=5 // pred_check_branch
      %143 = sbr.rel (%p140) target = $region32
    $region31: #{basic_cnn_forward_batched.1} parent=5 // pred_region
      %s144 = ssub.s32 %s10, 1
      %s145 = smul.u32 8, %s15
      %p146 = scmp.lt.s32.totalorder %s145, 15
      %s147 = scalar_select %p146, %s145, 15
      %s148 = smul.addr %s147, 8
      %s149 = scalar_lea.vmem %s0, %s148
      %p150 = pneg %p36
      %p151 = pneg %p33
      %p152 = pneg %p57
      %p153 = pneg %p54
      %p154 = pneg %p78
      %p155 = pneg %p75
      %p156 = pneg %p104
      %p157 = pneg %p101
      %s158 = smul.u32 8, %s15
      %p159 = scmp.lt.s32.totalorder %s158, 15
      %s160 = scalar_select %p159, %s158, 15
      %s161 = smul.addr %s160, 8
      %s162 = scalar_lea.vmem %s3, %s161
      %s163 = smul.u32 8, %s15
      %p164 = scmp.lt.s32.totalorder %s163, 15
      %s165 = scalar_select %p164, %s163, 15
      %s166 = smul.addr %s165, 8
      %s167 = scalar_lea.vmem %s0, %s166
      %s168 = smul.u32 8, %s15
      %s169 = smul.u32 8, %s15
      %p170 = scmp.lt.s32.totalorder %s169, 15
      %s171 = scalar_select %p170, %s169, 15
      %s172 = smul.addr %s171, 8
      %s173 = scalar_lea.vmem %s3, %s172
      %s174 = smul.u32 8, %s15
      %s175 = sld [smem:[#allocation2]]
      %v176 = vld [vmem:[%s167] sm:$0xff]
      %v177 = vld [vmem:[%s167 + $0x8] sm:$0xff]
      %v178 = vld [vmem:[%s167 + $0x10] sm:$0xff]
      %v179 = vld [vmem:[%s167 + $0x18] sm:$0xff]
      %v180 = vld [vmem:[%s167 + $0x20] sm:$0xff]
      %v181 = vld [vmem:[%s167 + $0x28] sm:$0xff]
      %v182 = vld [vmem:[%s167 + $0x30] sm:$0xff]
      %v183 = vld [vmem:[%s167 + $0x38] sm:$0xff]
      %v184 = vld [vmem:[%s1] sm:$0xff]
      %v185 = vld [vmem:[%s1 + $0x8] sm:$0xff]
      %v186 = vld [vmem:[%s1 + $0x10] sm:$0xff]
      %v187 = vld [vmem:[%s1 + $0x18] sm:$0x1f]
      %vm188 = vcmask 236544
      %v190 = vsel %vm188, %v176, 0
      %v193 = vsel %vm188, %v177, 0
      %v196 = vsel %vm188, %v178, 0
      %v199 = vsel %vm188, %v179, 0
      %v202 = vsel %vm188, %v180, 0
      %v205 = vsel %vm188, %v181, 0
      %v208 = vsel %vm188, %v182, 0
      %v211 = vsel %vm188, %v183, 0
      %vm213 = vcmask 1044480
      %v215 = vsel %vm213, %v187, 0
      %217 = vmatprep.subr.mxu0 0.0
      %v218 = vand.u32 %v184, 4294901760
      %219 = vmatpush1.msra.mxu0 %v218
      %220 = vmatprep.subr.mxu0 0.0
      %v221 = vand.u32 %v185, 4294901760
      %222 = vmatpush1.msra.mxu0 %v221
      %223 = vmatprep.subr.mxu0 0.0
      %v224 = vand.u32 %v186, 4294901760
      %225 = vmatpush1.msra.mxu0 %v224
      %226 = vmatprep.subr.mxu0 0.0
      %v227 = vand.u32 %v215, 4294901760
      %228 = vmatpush1.msra.mxu0 %v227
      %229 = vmatprep.subr.mxu0 0.0
      %230 = vmatpush1.msra.mxu0 0.0
      %231 = vmatprep.subr.mxu0 0.0
      %232 = vmatpush1.msra.mxu0 0.0
      %233 = vmatprep.subr.mxu0 0.0
      %234 = vmatpush1.msra.mxu0 0.0
      %235 = vmatprep.subr.mxu0 0.0
      %236 = vmatpush1.msra.mxu0 0.0
      %237 = vmatprep.subr.mxu0 0.0
      %238 = vmatpush1.msra.mxu0 0.0
      %239 = vmatprep.subr.mxu0 0.0
      %240 = vmatpush1.msra.mxu0 0.0
      %241 = vmatprep.subr.mxu0 0.0
      %242 = vmatpush1.msra.mxu0 0.0
      %243 = vmatprep.subr.mxu0 0.0
      %244 = vmatpush1.msra.mxu0 0.0
      %245 = vmatprep.subr.mxu0 0.0
      %246 = vmatpush1.msra.mxu0 0.0
      %247 = vmatprep.subr.mxu0 0.0
      %248 = vmatpush1.msra.mxu0 0.0
      %249 = vmatprep.subr.mxu0 0.0
      %250 = vmatpush1.msra.mxu0 0.0
      %251 = vmatprep.subr.mxu0 0.0
      %252 = vmatpush1.msra.mxu0 0.0
      %253 = vmatprep.subr.mxu0 0.0
      %254 = vmatpush1.msra.mxu0 0.0
      %255 = vmatprep.subr.mxu0 0.0
      %256 = vmatpush1.msra.mxu0 0.0
      %257 = vmatprep.subr.mxu0 0.0
      %258 = vmatpush1.msra.mxu0 0.0
      %259 = vmatprep.subr.mxu0 0.0
      %260 = vmatpush1.msra.mxu0 0.0
      %261 = vmatprep.subr.mxu0 0.0
      %262 = vmatpush1.msra.mxu0 0.0
      %263 = vmatprep.subr.mxu0 0.0
      %264 = vmatpush1.msra.mxu0 0.0
      %265 = vmatprep.subr.mxu0 0.0
      %266 = vmatpush1.msra.mxu0 0.0
      %267 = vmatprep.subr.mxu0 0.0
      %268 = vmatpush1.msra.mxu0 0.0
      %269 = vmatprep.subr.mxu0 0.0
      %270 = vmatpush1.msra.mxu0 0.0
      %271 = vmatprep.subr.mxu0 0.0
      %272 = vmatpush1.msra.mxu0 0.0
      %273 = vmatprep.subr.mxu0 0.0
      %274 = vmatpush1.msra.mxu0 0.0
      %275 = vmatprep.subr.mxu0 0.0
      %276 = vmatpush1.msra.mxu0 0.0
      %277 = vmatprep.subr.mxu0 0.0
      %278 = vmatpush1.msra.mxu0 0.0
      %279 = vmatprep.subr.mxu0 0.0
      %280 = vmatpush1.msra.mxu0 0.0
      %281 = vmatprep.subr.mxu0 0.0
      %282 = vmatpush1.msra.mxu0 0.0
      %283 = vmatprep.subr.mxu0 0.0
      %284 = vmatpush1.msra.mxu0 0.0
      %285 = vmatprep.mubr.f32.mxu0 0.0
      %v286 = vand.u32 %v190, 4294901760
      %v287 = vsub.f32 %v190, %v286
      %v288 = vand.u32 %v287, 4294901760
      %v289 = vsub.f32 %v287, %v288
      %v290 = vand.u32 %v289, 4294901760
      %291 = vmatmul.mubr.f32.gmra.mrb[0].mxu0 %v290
      %v292 = vpop.f32.mrb[0].mxu0
      %v293 = vadd.f32 0.0, %v292
      %v294 = vpop.f32.mrb[0].mxu0
      %295 = vmatprep.mubr.f32.mxu0 0.0
      %v296 = vand.u32 %v193, 4294901760
      %v297 = vsub.f32 %v193, %v296
      %v298 = vand.u32 %v297, 4294901760
      %v299 = vsub.f32 %v297, %v298
      %v300 = vand.u32 %v299, 4294901760
      %301 = vmatmul.mubr.f32.gmra.mrb[0].mxu0 %v300
      %v302 = vpop.f32.mrb[0].mxu0
      %v303 = vadd.f32 0.0, %v302
      %v304 = vpop.f32.mrb[0].mxu0
      %305 = vmatprep.mubr.f32.mxu0 0.0
      %v306 = vand.u32 %v196, 4294901760
      %v307 = vsub.f32 %v196, %v306
      %v308 = vand.u32 %v307, 4294901760
      %v309 = vsub.f32 %v307, %v308
      %v310 = vand.u32 %v309, 4294901760
      %311 = vmatmul.mubr.f32.gmra.mrb[0].mxu0 %v310
      %v312 = vpop.f32.mrb[0].mxu0
      %v313 = vadd.f32 0.0, %v312
      %v314 = vpop.f32.mrb[0].mxu0
      %315 = vmatprep.mubr.f32.mxu0 0.0
      %v316 = vand.u32 %v199, 4294901760
      %v317 = vsub.f32 %v199, %v316
      %v318 = vand.u32 %v317, 4294901760
      %v319 = vsub.f32 %v317, %v318
      %v320 = vand.u32 %v319, 4294901760
      %321 = vmatmul.mubr.f32.gmra.mrb[0].mxu0 %v320
      %v322 = vpop.f32.mrb[0].mxu0
      %v323 = vadd.f32 0.0, %v322
      %v324 = vpop.f32.mrb[0].mxu0
      %325 = vmatprep.mubr.f32.mxu0 0.0
      %v326 = vand.u32 %v202, 4294901760
      %v327 = vsub.f32 %v202, %v326
      %v328 = vand.u32 %v327, 4294901760
      %v329 = vsub.f32 %v327, %v328
      %v330 = vand.u32 %v329, 4294901760
      %331 = vmatmul.mubr.f32.gmra.mrb[0].mxu0 %v330
      %v332 = vpop.f32.mrb[0].mxu0
      %v333 = vadd.f32 0.0, %v332
      %v334 = vpop.f32.mrb[0].mxu0
      %335 = vmatprep.mubr.f32.mxu0 0.0
      %v336 = vand.u32 %v205, 4294901760
      %v337 = vsub.f32 %v205, %v336
      %v338 = vand.u32 %v337, 4294901760
      %v339 = vsub.f32 %v337, %v338
      %v340 = vand.u32 %v339, 4294901760
      %341 = vmatmul.mubr.f32.gmra.mrb[0].mxu0 %v340
      %v342 = vpop.f32.mrb[0].mxu0
      %v343 = vadd.f32 0.0, %v342
      %v344 = vpop.f32.mrb[0].mxu0
      %345 = vmatprep.mubr.f32.mxu0 0.0
      %v346 = vand.u32 %v208, 4294901760
      %v347 = vsub.f32 %v208, %v346
      %v348 = vand.u32 %v347, 4294901760
      %v349 = vsub.f32 %v347, %v348
      %v350 = vand.u32 %v349, 4294901760
      %351 = vmatmul.mubr.f32.gmra.mrb[0].mxu0 %v350
      %v352 = vpop.f32.mrb[0].mxu0
      %v353 = vadd.f32 0.0, %v352
      %v354 = vpop.f32.mrb[0].mxu0
      %355 = vmatprep.mubr.f32.mxu0 0.0
      %v356 = vand.u32 %v211, 4294901760
      %v357 = vsub.f32 %v211, %v356
      %v358 = vand.u32 %v357, 4294901760
      %v359 = vsub.f32 %v357, %v358
      %v360 = vand.u32 %v359, 4294901760
      %361 = vmatmul.mubr.f32.gmra.mrb[0].mxu0 %v360
      %v362 = vpop.f32.mrb[0].mxu0
      %v363 = vadd.f32 0.0, %v362
      %v364 = vpop.f32.mrb[0].mxu0
      %365 = vdwg.mxu0
      %366 = vmatprep.subr.mxu0 0.0
      %v367 = vand.u32 %v184, 4294901760
      %v368 = vsub.f32 %v184, %v367
      %v369 = vand.u32 %v368, 4294901760
      %v370 = vsub.f32 %v368, %v369
      %v371 = vand.u32 %v370, 4294901760
      %372 = vmatpush1.msra.mxu0 %v371
      %373 = vmatprep.subr.mxu0 0.0
      %v374 = vand.u32 %v185, 4294901760
      %v375 = vsub.f32 %v185, %v374
      %v376 = vand.u32 %v375, 4294901760
      %v377 = vsub.f32 %v375, %v376
      %v378 = vand.u32 %v377, 4294901760
      %379 = vmatpush1.msra.mxu0 %v378
      %380 = vmatprep.subr.mxu0 0.0
      %v381 = vand.u32 %v186, 4294901760
      %v382 = vsub.f32 %v186, %v381
      %v383 = vand.u32 %v382, 4294901760
      %v384 = vsub.f32 %v382, %v383
      %v385 = vand.u32 %v384, 4294901760
      %386 = vmatpush1.msra.mxu0 %v385
      %387 = vmatprep.subr.mxu0 0.0
      %v388 = vand.u32 %v215, 4294901760
      %v389 = vsub.f32 %v215, %v388
      %v390 = vand.u32 %v389, 4294901760
      %v391 = vsub.f32 %v389, %v390
      %v392 = vand.u32 %v391, 4294901760
      %393 = vmatpush1.msra.mxu0 %v392
      %394 = vmatprep.subr.mxu0 0.0
      %395 = vmatpush1.msra.mxu0 0.0
      %396 = vmatprep.subr.mxu0 0.0
      %397 = vmatpush1.msra.mxu0 0.0
      %398 = vmatprep.subr.mxu0 0.0
      %399 = vmatpush1.msra.mxu0 0.0
      %400 = vmatprep.subr.mxu0 0.0
      %401 = vmatpush1.msra.mxu0 0.0
      %402 = vmatprep.subr.mxu0 0.0
      %403 = vmatpush1.msra.mxu0 0.0
      %404 = vmatprep.subr.mxu0 0.0
      %405 = vmatpush1.msra.mxu0 0.0
      %406 = vmatprep.subr.mxu0 0.0
      %407 = vmatpush1.msra.mxu0 0.0
      %408 = vmatprep.subr.mxu0 0.0
      %409 = vmatpush1.msra.mxu0 0.0
      %410 = vmatprep.subr.mxu0 0.0
      %411 = vmatpush1.msra.mxu0 0.0
      %412 = vmatprep.subr.mxu0 0.0
      %413 = vmatpush1.msra.mxu0 0.0
      %414 = vmatprep.subr.mxu0 0.0
      %415 = vmatpush1.msra.mxu0 0.0
      %416 = vmatprep.subr.mxu0 0.0
      %417 = vmatpush1.msra.mxu0 0.0
      %418 = vmatprep.subr.mxu0 0.0
      %419 = vmatpush1.msra.mxu0 0.0
      %420 = vmatprep.subr.mxu0 0.0
      %421 = vmatpush1.msra.mxu0 0.0
      %422 = vmatprep.subr.mxu0 0.0
      %423 = vmatpush1.msra.mxu0 0.0
      %424 = vmatprep.subr.mxu0 0.0
      %425 = vmatpush1.msra.mxu0 0.0
      %426 = vmatprep.subr.mxu0 0.0
      %427 = vmatpush1.msra.mxu0 0.0
      %428 = vmatprep.subr.mxu0 0.0
      %429 = vmatpush1.msra.mxu0 0.0
      %430 = vmatprep.subr.mxu0 0.0
      %431 = vmatpush1.msra.mxu0 0.0
      %432 = vmatprep.subr.mxu0 0.0
      %433 = vmatpush1.msra.mxu0 0.0
      %434 = vmatprep.subr.mxu0 0.0
      %435 = vmatpush1.msra.mxu0 0.0
      %436 = vmatprep.subr.mxu0 0.0
      %437 = vmatpush1.msra.mxu0 0.0
      %438 = vmatprep.subr.mxu0 0.0
      %439 = vmatpush1.msra.mxu0 0.0
      %440 = vmatprep.subr.mxu0 0.0
      %441 = vmatpush1.msra.mxu0 0.0
      %442 = vmatprep.subr.mxu0 0.0
      %443 = vmatpush1.msra.mxu0 0.0
      %444 = vmatprep.subr.mxu0 0.0
      %445 = vmatpush1.msra.mxu0 0.0
      %446 = vmatprep.subr.mxu0 0.0
      %447 = vmatpush1.msra.mxu0 0.0
      %448 = vmatprep.subr.mxu0 0.0
      %449 = vmatpush1.msra.mxu0 0.0
      %450 = vmatprep.mubr.f32.mxu0 0.0
      %v451 = vand.u32 %v190, 4294901760
      %452 = vmatmul.mubr.f32.gmra.mrb[0].mxu0 %v451
      %v453 = vpop.f32.mrb[0].mxu0
      %v454 = vadd.f32 %v293, %v453
      %v455 = vpop.f32.mrb[0].mxu0
      %456 = vmatprep.mubr.f32.mxu0 0.0
      %v457 = vand.u32 %v193, 4294901760
      %458 = vmatmul.mubr.f32.gmra.mrb[0].mxu0 %v457
      %v459 = vpop.f32.mrb[0].mxu0
      %v460 = vadd.f32 %v303, %v459
      %v461 = vpop.f32.mrb[0].mxu0
      %462 = vmatprep.mubr.f32.mxu0 0.0
      %v463 = vand.u32 %v196, 4294901760
      %464 = vmatmul.mubr.f32.gmra.mrb[0].mxu0 %v463
      %v465 = vpop.f32.mrb[0].mxu0
      %v466 = vadd.f32 %v313, %v465
      %v467 = vpop.f32.mrb[0].mxu0
      %468 = vmatprep.mubr.f32.mxu0 0.0
      %v469 = vand.u32 %v199, 4294901760
      %470 = vmatmul.mubr.f32.gmra.mrb[0].mxu0 %v469
      %v471 = vpop.f32.mrb[0].mxu0
      %v472 = vadd.f32 %v323, %v471
      %v473 = vpop.f32.mrb[0].mxu0
      %474 = vmatprep.mubr.f32.mxu0 0.0
      %v475 = vand.u32 %v202, 4294901760
      %476 = vmatmul.mubr.f32.gmra.mrb[0].mxu0 %v475
      %v477 = vpop.f32.mrb[0].mxu0
      %v478 = vadd.f32 %v333, %v477
      %v479 = vpop.f32.mrb[0].mxu0
      %480 = vmatprep.mubr.f32.mxu0 0.0
      %v481 = vand.u32 %v205, 4294901760
      %482 = vmatmul.mubr.f32.gmra.mrb[0].mxu0 %v481
      %v483 = vpop.f32.mrb[0].mxu0
      %v484 = vadd.f32 %v343, %v483
      %v485 = vpop.f32.mrb[0].mxu0
      %486 = vmatprep.mubr.f32.mxu0 0.0
      %v487 = vand.u32 %v208, 4294901760
      %488 = vmatmul.mubr.f32.gmra.mrb[0].mxu0 %v487
      %v489 = vpop.f32.mrb[0].mxu0
      %v490 = vadd.f32 %v353, %v489
      %v491 = vpop.f32.mrb[0].mxu0
      %492 = vmatprep.mubr.f32.mxu0 0.0
      %v493 = vand.u32 %v211, 4294901760
      %494 = vmatmul.mubr.f32.gmra.mrb[0].mxu0 %v493
      %v495 = vpop.f32.mrb[0].mxu0
      %v496 = vadd.f32 %v363, %v495
      %v497 = vpop.f32.mrb[0].mxu0
      %498 = vdwg.mxu0
      %499 = vmatprep.subr.mxu0 0.0
      %v500 = vand.u32 %v184, 4294901760
      %v501 = vsub.f32 %v184, %v500
      %502 = vmatpush1.msra.mxu0 %v501
      %503 = vmatprep.subr.mxu0 0.0
      %v504 = vand.u32 %v185, 4294901760
      %v505 = vsub.f32 %v185, %v504
      %506 = vmatpush1.msra.mxu0 %v505
      %507 = vmatprep.subr.mxu0 0.0
      %v508 = vand.u32 %v186, 4294901760
      %v509 = vsub.f32 %v186, %v508
      %510 = vmatpush1.msra.mxu0 %v509
      %511 = vmatprep.subr.mxu0 0.0
      %v512 = vand.u32 %v215, 4294901760
      %v513 = vsub.f32 %v215, %v512
      %514 = vmatpush1.msra.mxu0 %v513
      %515 = vmatprep.subr.mxu0 0.0
      %516 = vmatpush1.msra.mxu0 0.0
      %517 = vmatprep.subr.mxu0 0.0
      %518 = vmatpush1.msra.mxu0 0.0
      %519 = vmatprep.subr.mxu0 0.0
      %520 = vmatpush1.msra.mxu0 0.0
      %521 = vmatprep.subr.mxu0 0.0
      %522 = vmatpush1.msra.mxu0 0.0
      %523 = vmatprep.subr.mxu0 0.0
      %524 = vmatpush1.msra.mxu0 0.0
      %525 = vmatprep.subr.mxu0 0.0
      %526 = vmatpush1.msra.mxu0 0.0
      %527 = vmatprep.subr.mxu0 0.0
      %528 = vmatpush1.msra.mxu0 0.0
      %529 = vmatprep.subr.mxu0 0.0
      %530 = vmatpush1.msra.mxu0 0.0
      %531 = vmatprep.subr.mxu0 0.0
      %532 = vmatpush1.msra.mxu0 0.0
      %533 = vmatprep.subr.mxu0 0.0
      %534 = vmatpush1.msra.mxu0 0.0
      %535 = vmatprep.subr.mxu0 0.0
      %536 = vmatpush1.msra.mxu0 0.0
      %537 = vmatprep.subr.mxu0 0.0
      %538 = vmatpush1.msra.mxu0 0.0
      %539 = vmatprep.subr.mxu0 0.0
      %540 = vmatpush1.msra.mxu0 0.0
      %541 = vmatprep.subr.mxu0 0.0
      %542 = vmatpush1.msra.mxu0 0.0
      %543 = vmatprep.subr.mxu0 0.0
      %544 = vmatpush1.msra.mxu0 0.0
      %545 = vmatprep.subr.mxu0 0.0
      %546 = vmatpush1.msra.mxu0 0.0
      %547 = vmatprep.subr.mxu0 0.0
      %548 = vmatpush1.msra.mxu0 0.0
      %549 = vmatprep.subr.mxu0 0.0
      %550 = vmatpush1.msra.mxu0 0.0
      %551 = vmatprep.subr.mxu0 0.0
      %552 = vmatpush1.msra.mxu0 0.0
      %553 = vmatprep.subr.mxu0 0.0
      %554 = vmatpush1.msra.mxu0 0.0
      %555 = vmatprep.subr.mxu0 0.0
      %556 = vmatpush1.msra.mxu0 0.0
      %557 = vmatprep.subr.mxu0 0.0
      %558 = vmatpush1.msra.mxu0 0.0
      %559 = vmatprep.subr.mxu0 0.0
      %560 = vmatpush1.msra.mxu0 0.0
      %561 = vmatprep.subr.mxu0 0.0
      %562 = vmatpush1.msra.mxu0 0.0
      %563 = vmatprep.subr.mxu0 0.0
      %564 = vmatpush1.msra.mxu0 0.0
      %565 = vmatprep.subr.mxu0 0.0
      %566 = vmatpush1.msra.mxu0 0.0
      %567 = vmatprep.subr.mxu0 0.0
      %568 = vmatpush1.msra.mxu0 0.0
      %569 = vmatprep.subr.mxu0 0.0
      %570 = vmatpush1.msra.mxu0 0.0
      %571 = vmatprep.mubr.f32.mxu0 0.0
      %v572 = vand.u32 %v190, 4294901760
      %v573 = vsub.f32 %v190, %v572
      %574 = vmatmul.mubr.f32.gmra.mrb[0].mxu0 %v573
      %v575 = vpop.f32.mrb[0].mxu0
      %v576 = vadd.f32 %v454, %v575
      %v577 = vpop.f32.mrb[0].mxu0
      %578 = vmatprep.mubr.f32.mxu0 0.0
      %v579 = vand.u32 %v193, 4294901760
      %v580 = vsub.f32 %v193, %v579
      %581 = vmatmul.mubr.f32.gmra.mrb[0].mxu0 %v580
      %v582 = vpop.f32.mrb[0].mxu0
      %v583 = vadd.f32 %v460, %v582
      %v584 = vpop.f32.mrb[0].mxu0
      %585 = vmatprep.mubr.f32.mxu0 0.0
      %v586 = vand.u32 %v196, 4294901760
      %v587 = vsub.f32 %v196, %v586
      %588 = vmatmul.mubr.f32.gmra.mrb[0].mxu0 %v587
      %v589 = vpop.f32.mrb[0].mxu0
      %v590 = vadd.f32 %v466, %v589
      %v591 = vpop.f32.mrb[0].mxu0
      %592 = vmatprep.mubr.f32.mxu0 0.0
      %v593 = vand.u32 %v199, 4294901760
      %v594 = vsub.f32 %v199, %v593
      %595 = vmatmul.mubr.f32.gmra.mrb[0].mxu0 %v594
      %v596 = vpop.f32.mrb[0].mxu0
      %v597 = vadd.f32 %v472, %v596
      %v598 = vpop.f32.mrb[0].mxu0
      %599 = vmatprep.mubr.f32.mxu0 0.0
      %v600 = vand.u32 %v202, 4294901760
      %v601 = vsub.f32 %v202, %v600
      %602 = vmatmul.mubr.f32.gmra.mrb[0].mxu0 %v601
      %v603 = vpop.f32.mrb[0].mxu0
      %v604 = vadd.f32 %v478, %v603
      %v605 = vpop.f32.mrb[0].mxu0
      %606 = vmatprep.mubr.f32.mxu0 0.0
      %v607 = vand.u32 %v205, 4294901760
      %v608 = vsub.f32 %v205, %v607
      %609 = vmatmul.mubr.f32.gmra.mrb[0].mxu0 %v608
      %v610 = vpop.f32.mrb[0].mxu0
      %v611 = vadd.f32 %v484, %v610
      %v612 = vpop.f32.mrb[0].mxu0
      %613 = vmatprep.mubr.f32.mxu0 0.0
      %v614 = vand.u32 %v208, 4294901760
      %v615 = vsub.f32 %v208, %v614
      %616 = vmatmul.mubr.f32.gmra.mrb[0].mxu0 %v615
      %v617 = vpop.f32.mrb[0].mxu0
      %v618 = vadd.f32 %v490, %v617
      %v619 = vpop.f32.mrb[0].mxu0
      %620 = vmatprep.mubr.f32.mxu0 0.0
      %v621 = vand.u32 %v211, 4294901760
      %v622 = vsub.f32 %v211, %v621
      %623 = vmatmul.mubr.f32.gmra.mrb[0].mxu0 %v622
      %v624 = vpop.f32.mrb[0].mxu0
      %v625 = vadd.f32 %v496, %v624
      %v626 = vpop.f32.mrb[0].mxu0
      %627 = vdwg.mxu0
      %628 = vmatprep.subr.mxu0 0.0
      %v629 = vand.u32 %v184, 4294901760
      %630 = vmatpush1.msra.mxu0 %v629
      %631 = vmatprep.subr.mxu0 0.0
      %v632 = vand.u32 %v185, 4294901760
      %633 = vmatpush1.msra.mxu0 %v632
      %634 = vmatprep.subr.mxu0 0.0
      %v635 = vand.u32 %v186, 4294901760
      %636 = vmatpush1.msra.mxu0 %v635
      %637 = vmatprep.subr.mxu0 0.0
      %v638 = vand.u32 %v215, 4294901760
      %639 = vmatpush1.msra.mxu0 %v638
      %640 = vmatprep.subr.mxu0 0.0
      %641 = vmatpush1.msra.mxu0 0.0
      %642 = vmatprep.subr.mxu0 0.0
      %643 = vmatpush1.msra.mxu0 0.0
      %644 = vmatprep.subr.mxu0 0.0
      %645 = vmatpush1.msra.mxu0 0.0
      %646 = vmatprep.subr.mxu0 0.0
      %647 = vmatpush1.msra.mxu0 0.0
      %648 = vmatprep.subr.mxu0 0.0
      %649 = vmatpush1.msra.mxu0 0.0
      %650 = vmatprep.subr.mxu0 0.0
      %651 = vmatpush1.msra.mxu0 0.0
      %652 = vmatprep.subr.mxu0 0.0
      %653 = vmatpush1.msra.mxu0 0.0
      %654 = vmatprep.subr.mxu0 0.0
      %655 = vmatpush1.msra.mxu0 0.0
      %656 = vmatprep.subr.mxu0 0.0
      %657 = vmatpush1.msra.mxu0 0.0
      %658 = vmatprep.subr.mxu0 0.0
      %659 = vmatpush1.msra.mxu0 0.0
      %660 = vmatprep.subr.mxu0 0.0
      %661 = vmatpush1.msra.mxu0 0.0
      %662 = vmatprep.subr.mxu0 0.0
      %663 = vmatpush1.msra.mxu0 0.0
      %664 = vmatprep.subr.mxu0 0.0
      %665 = vmatpush1.msra.mxu0 0.0
      %666 = vmatprep.subr.mxu0 0.0
      %667 = vmatpush1.msra.mxu0 0.0
      %668 = vmatprep.subr.mxu0 0.0
      %669 = vmatpush1.msra.mxu0 0.0
      %670 = vmatprep.subr.mxu0 0.0
      %671 = vmatpush1.msra.mxu0 0.0
      %672 = vmatprep.subr.mxu0 0.0
      %673 = vmatpush1.msra.mxu0 0.0
      %674 = vmatprep.subr.mxu0 0.0
      %675 = vmatpush1.msra.mxu0 0.0
      %676 = vmatprep.subr.mxu0 0.0
      %677 = vmatpush1.msra.mxu0 0.0
      %678 = vmatprep.subr.mxu0 0.0
      %679 = vmatpush1.msra.mxu0 0.0
      %680 = vmatprep.subr.mxu0 0.0
      %681 = vmatpush1.msra.mxu0 0.0
      %682 = vmatprep.subr.mxu0 0.0
      %683 = vmatpush1.msra.mxu0 0.0
      %684 = vmatprep.subr.mxu0 0.0
      %685 = vmatpush1.msra.mxu0 0.0
      %686 = vmatprep.subr.mxu0 0.0
      %687 = vmatpush1.msra.mxu0 0.0
      %688 = vmatprep.subr.mxu0 0.0
      %689 = vmatpush1.msra.mxu0 0.0
      %690 = vmatprep.subr.mxu0 0.0
      %691 = vmatpush1.msra.mxu0 0.0
      %692 = vmatprep.subr.mxu0 0.0
      %693 = vmatpush1.msra.mxu0 0.0
      %694 = vmatprep.subr.mxu0 0.0
      %695 = vmatpush1.msra.mxu0 0.0
      %696 = vmatprep.mubr.f32.mxu0 0.0
      %v697 = vand.u32 %v190, 4294901760
      %v698 = vsub.f32 %v190, %v697
      %v699 = vand.u32 %v698, 4294901760
      %700 = vmatmul.mubr.f32.gmra.mrb[0].mxu0 %v699
      %v701 = vpop.f32.mrb[0].mxu0
      %v702 = vadd.f32 %v576, %v701
      %v703 = vpop.f32.mrb[0].mxu0
      %704 = vmatprep.mubr.f32.mxu0 0.0
      %v705 = vand.u32 %v193, 4294901760
      %v706 = vsub.f32 %v193, %v705
      %v707 = vand.u32 %v706, 4294901760
      %708 = vmatmul.mubr.f32.gmra.mrb[0].mxu0 %v707
      %v709 = vpop.f32.mrb[0].mxu0
      %v710 = vadd.f32 %v583, %v709
      %v711 = vpop.f32.mrb[0].mxu0
      %712 = vmatprep.mubr.f32.mxu0 0.0
      %v713 = vand.u32 %v196, 4294901760
      %v714 = vsub.f32 %v196, %v713
      %v715 = vand.u32 %v714, 4294901760
      %716 = vmatmul.mubr.f32.gmra.mrb[0].mxu0 %v715
      %v717 = vpop.f32.mrb[0].mxu0
      %v718 = vadd.f32 %v590, %v717
      %v719 = vpop.f32.mrb[0].mxu0
      %720 = vmatprep.mubr.f32.mxu0 0.0
      %v721 = vand.u32 %v199, 4294901760
      %v722 = vsub.f32 %v199, %v721
      %v723 = vand.u32 %v722, 4294901760
      %724 = vmatmul.mubr.f32.gmra.mrb[0].mxu0 %v723
      %v725 = vpop.f32.mrb[0].mxu0
      %v726 = vadd.f32 %v597, %v725
      %v727 = vpop.f32.mrb[0].mxu0
      %728 = vmatprep.mubr.f32.mxu0 0.0
      %v729 = vand.u32 %v202, 4294901760
      %v730 = vsub.f32 %v202, %v729
      %v731 = vand.u32 %v730, 4294901760
      %732 = vmatmul.mubr.f32.gmra.mrb[0].mxu0 %v731
      %v733 = vpop.f32.mrb[0].mxu0
      %v734 = vadd.f32 %v604, %v733
      %v735 = vpop.f32.mrb[0].mxu0
      %736 = vmatprep.mubr.f32.mxu0 0.0
      %v737 = vand.u32 %v205, 4294901760
      %v738 = vsub.f32 %v205, %v737
      %v739 = vand.u32 %v738, 4294901760
      %740 = vmatmul.mubr.f32.gmra.mrb[0].mxu0 %v739
      %v741 = vpop.f32.mrb[0].mxu0
      %v742 = vadd.f32 %v611, %v741
      %v743 = vpop.f32.mrb[0].mxu0
      %744 = vmatprep.mubr.f32.mxu0 0.0
      %v745 = vand.u32 %v208, 4294901760
      %v746 = vsub.f32 %v208, %v745
      %v747 = vand.u32 %v746, 4294901760
      %748 = vmatmul.mubr.f32.gmra.mrb[0].mxu0 %v747
      %v749 = vpop.f32.mrb[0].mxu0
      %v750 = vadd.f32 %v618, %v749
      %v751 = vpop.f32.mrb[0].mxu0
      %752 = vmatprep.mubr.f32.mxu0 0.0
      %v753 = vand.u32 %v211, 4294901760
      %v754 = vsub.f32 %v211, %v753
      %v755 = vand.u32 %v754, 4294901760
      %756 = vmatmul.mubr.f32.gmra.mrb[0].mxu0 %v755
      %v757 = vpop.f32.mrb[0].mxu0
      %v758 = vadd.f32 %v625, %v757
      %v759 = vpop.f32.mrb[0].mxu0
      %760 = vdwg.mxu0
      %761 = vmatprep.subr.mxu0 0.0
      %v762 = vand.u32 %v184, 4294901760
      %v763 = vsub.f32 %v184, %v762
      %v764 = vand.u32 %v763, 4294901760
      %765 = vmatpush1.msra.mxu0 %v764
      %766 = vmatprep.subr.mxu0 0.0
      %v767 = vand.u32 %v185, 4294901760
      %v768 = vsub.f32 %v185, %v767
      %v769 = vand.u32 %v768, 4294901760
      %770 = vmatpush1.msra.mxu0 %v769
      %771 = vmatprep.subr.mxu0 0.0
      %v772 = vand.u32 %v186, 4294901760
      %v773 = vsub.f32 %v186, %v772
      %v774 = vand.u32 %v773, 4294901760
      %775 = vmatpush1.msra.mxu0 %v774
      %776 = vmatprep.subr.mxu0 0.0
      %v777 = vand.u32 %v215, 4294901760
      %v778 = vsub.f32 %v215, %v777
      %v779 = vand.u32 %v778, 4294901760
      %780 = vmatpush1.msra.mxu0 %v779
      %781 = vmatprep.subr.mxu0 0.0
      %782 = vmatpush1.msra.mxu0 0.0
      %783 = vmatprep.subr.mxu0 0.0
      %784 = vmatpush1.msra.mxu0 0.0
      %785 = vmatprep.subr.mxu0 0.0
      %786 = vmatpush1.msra.mxu0 0.0
      %787 = vmatprep.subr.mxu0 0.0
      %788 = vmatpush1.msra.mxu0 0.0
      %789 = vmatprep.subr.mxu0 0.0
      %790 = vmatpush1.msra.mxu0 0.0
      %791 = vmatprep.subr.mxu0 0.0
      %792 = vmatpush1.msra.mxu0 0.0
      %793 = vmatprep.subr.mxu0 0.0
      %794 = vmatpush1.msra.mxu0 0.0
      %795 = vmatprep.subr.mxu0 0.0
      %796 = vmatpush1.msra.mxu0 0.0
      %797 = vmatprep.subr.mxu0 0.0
      %798 = vmatpush1.msra.mxu0 0.0
      %799 = vmatprep.subr.mxu0 0.0
      %800 = vmatpush1.msra.mxu0 0.0
      %801 = vmatprep.subr.mxu0 0.0
      %802 = vmatpush1.msra.mxu0 0.0
      %803 = vmatprep.subr.mxu0 0.0
      %804 = vmatpush1.msra.mxu0 0.0
      %805 = vmatprep.subr.mxu0 0.0
      %806 = vmatpush1.msra.mxu0 0.0
      %807 = vmatprep.subr.mxu0 0.0
      %808 = vmatpush1.msra.mxu0 0.0
      %809 = vmatprep.subr.mxu0 0.0
      %810 = vmatpush1.msra.mxu0 0.0
      %811 = vmatprep.subr.mxu0 0.0
      %812 = vmatpush1.msra.mxu0 0.0
      %813 = vmatprep.subr.mxu0 0.0
      %814 = vmatpush1.msra.mxu0 0.0
      %815 = vmatprep.subr.mxu0 0.0
      %816 = vmatpush1.msra.mxu0 0.0
      %817 = vmatprep.subr.mxu0 0.0
      %818 = vmatpush1.msra.mxu0 0.0
      %819 = vmatprep.subr.mxu0 0.0
      %820 = vmatpush1.msra.mxu0 0.0
      %821 = vmatprep.subr.mxu0 0.0
      %822 = vmatpush1.msra.mxu0 0.0
      %823 = vmatprep.subr.mxu0 0.0
      %824 = vmatpush1.msra.mxu0 0.0
      %825 = vmatprep.subr.mxu0 0.0
      %826 = vmatpush1.msra.mxu0 0.0
      %827 = vmatprep.subr.mxu0 0.0
      %828 = vmatpush1.msra.mxu0 0.0
      %829 = vmatprep.subr.mxu0 0.0
      %830 = vmatpush1.msra.mxu0 0.0
      %831 = vmatprep.subr.mxu0 0.0
      %832 = vmatpush1.msra.mxu0 0.0
      %833 = vmatprep.subr.mxu0 0.0
      %834 = vmatpush1.msra.mxu0 0.0
      %835 = vmatprep.subr.mxu0 0.0
      %836 = vmatpush1.msra.mxu0 0.0
      %837 = vmatprep.mubr.f32.mxu0 0.0
      %v838 = vand.u32 %v190, 4294901760
      %839 = vmatmul.mubr.f32.gmra.mrb[0].mxu0 %v838
      %v840 = vpop.f32.mrb[0].mxu0
      %v841 = vadd.f32 %v702, %v840
      %v842 = vpop.f32.mrb[0].mxu0
      %843 = vmatprep.mubr.f32.mxu0 0.0
      %v844 = vand.u32 %v193, 4294901760
      %845 = vmatmul.mubr.f32.gmra.mrb[0].mxu0 %v844
      %v846 = vpop.f32.mrb[0].mxu0
      %v847 = vadd.f32 %v710, %v846
      %v848 = vpop.f32.mrb[0].mxu0
      %849 = vmatprep.mubr.f32.mxu0 0.0
      %v850 = vand.u32 %v196, 4294901760
      %851 = vmatmul.mubr.f32.gmra.mrb[0].mxu0 %v850
      %v852 = vpop.f32.mrb[0].mxu0
      %v853 = vadd.f32 %v718, %v852
      %v854 = vpop.f32.mrb[0].mxu0
      %855 = vmatprep.mubr.f32.mxu0 0.0
      %v856 = vand.u32 %v199, 4294901760
      %857 = vmatmul.mubr.f32.gmra.mrb[0].mxu0 %v856
      %v858 = vpop.f32.mrb[0].mxu0
      %v859 = vadd.f32 %v726, %v858
      %v860 = vpop.f32.mrb[0].mxu0
      %861 = vmatprep.mubr.f32.mxu0 0.0
      %v862 = vand.u32 %v202, 4294901760
      %863 = vmatmul.mubr.f32.gmra.mrb[0].mxu0 %v862
      %v864 = vpop.f32.mrb[0].mxu0
      %v865 = vadd.f32 %v734, %v864
      %v866 = vpop.f32.mrb[0].mxu0
      %867 = vmatprep.mubr.f32.mxu0 0.0
      %v868 = vand.u32 %v205, 4294901760
      %869 = vmatmul.mubr.f32.gmra.mrb[0].mxu0 %v868
      %v870 = vpop.f32.mrb[0].mxu0
      %v871 = vadd.f32 %v742, %v870
      %v872 = vpop.f32.mrb[0].mxu0
      %873 = vmatprep.mubr.f32.mxu0 0.0
      %v874 = vand.u32 %v208, 4294901760
      %875 = vmatmul.mubr.f32.gmra.mrb[0].mxu0 %v874
      %v876 = vpop.f32.mrb[0].mxu0
      %v877 = vadd.f32 %v750, %v876
      %v878 = vpop.f32.mrb[0].mxu0
      %879 = vmatprep.mubr.f32.mxu0 0.0
      %v880 = vand.u32 %v211, 4294901760
      %881 = vmatmul.mubr.f32.gmra.mrb[0].mxu0 %v880
      %v882 = vpop.f32.mrb[0].mxu0
      %v883 = vadd.f32 %v758, %v882
      %v884 = vpop.f32.mrb[0].mxu0
      %885 = vdwg.mxu0
      %886 = vmatprep.subr.mxu0 0.0
      %v887 = vand.u32 %v184, 4294901760
      %888 = vmatpush1.msra.mxu0 %v887
      %889 = vmatprep.subr.mxu0 0.0
      %v890 = vand.u32 %v185, 4294901760
      %891 = vmatpush1.msra.mxu0 %v890
      %892 = vmatprep.subr.mxu0 0.0
      %v893 = vand.u32 %v186, 4294901760
      %894 = vmatpush1.msra.mxu0 %v893
      %895 = vmatprep.subr.mxu0 0.0
      %v896 = vand.u32 %v215, 4294901760
      %897 = vmatpush1.msra.mxu0 %v896
      %898 = vmatprep.subr.mxu0 0.0
      %899 = vmatpush1.msra.mxu0 0.0
      %900 = vmatprep.subr.mxu0 0.0
      %901 = vmatpush1.msra.mxu0 0.0
      %902 = vmatprep.subr.mxu0 0.0
      %903 = vmatpush1.msra.mxu0 0.0
      %904 = vmatprep.subr.mxu0 0.0
      %905 = vmatpush1.msra.mxu0 0.0
      %906 = vmatprep.subr.mxu0 0.0
      %907 = vmatpush1.msra.mxu0 0.0
      %908 = vmatprep.subr.mxu0 0.0
      %909 = vmatpush1.msra.mxu0 0.0
      %910 = vmatprep.subr.mxu0 0.0
      %911 = vmatpush1.msra.mxu0 0.0
      %912 = vmatprep.subr.mxu0 0.0
      %913 = vmatpush1.msra.mxu0 0.0
      %914 = vmatprep.subr.mxu0 0.0
      %915 = vmatpush1.msra.mxu0 0.0
      %916 = vmatprep.subr.mxu0 0.0
      %917 = vmatpush1.msra.mxu0 0.0
      %918 = vmatprep.subr.mxu0 0.0
      %919 = vmatpush1.msra.mxu0 0.0
      %920 = vmatprep.subr.mxu0 0.0
      %921 = vmatpush1.msra.mxu0 0.0
      %922 = vmatprep.subr.mxu0 0.0
      %923 = vmatpush1.msra.mxu0 0.0
      %924 = vmatprep.subr.mxu0 0.0
      %925 = vmatpush1.msra.mxu0 0.0
      %926 = vmatprep.subr.mxu0 0.0
      %927 = vmatpush1.msra.mxu0 0.0
      %928 = vmatprep.subr.mxu0 0.0
      %929 = vmatpush1.msra.mxu0 0.0
      %930 = vmatprep.subr.mxu0 0.0
      %931 = vmatpush1.msra.mxu0 0.0
      %932 = vmatprep.subr.mxu0 0.0
      %933 = vmatpush1.msra.mxu0 0.0
      %934 = vmatprep.subr.mxu0 0.0
      %935 = vmatpush1.msra.mxu0 0.0
      %936 = vmatprep.subr.mxu0 0.0
      %937 = vmatpush1.msra.mxu0 0.0
      %938 = vmatprep.subr.mxu0 0.0
      %939 = vmatpush1.msra.mxu0 0.0
      %940 = vmatprep.subr.mxu0 0.0
      %941 = vmatpush1.msra.mxu0 0.0
      %942 = vmatprep.subr.mxu0 0.0
      %943 = vmatpush1.msra.mxu0 0.0
      %944 = vmatprep.subr.mxu0 0.0
      %945 = vmatpush1.msra.mxu0 0.0
      %946 = vmatprep.subr.mxu0 0.0
      %947 = vmatpush1.msra.mxu0 0.0
      %948 = vmatprep.subr.mxu0 0.0
      %949 = vmatpush1.msra.mxu0 0.0
      %950 = vmatprep.subr.mxu0 0.0
      %951 = vmatpush1.msra.mxu0 0.0
      %952 = vmatprep.subr.mxu0 0.0
      %953 = vmatpush1.msra.mxu0 0.0
      %954 = vmatprep.mubr.f32.mxu0 0.0
      %v955 = vand.u32 %v190, 4294901760
      %956 = vmatmul.mubr.f32.gmra.mrb[0].mxu0 %v955
      %v957 = vpop.f32.mrb[0].mxu0
      %v958 = vadd.f32 %v841, %v957
      %v959 = vpop.f32.mrb[0].mxu0
      %960 = vmatprep.mubr.f32.mxu0 0.0
      %v961 = vand.u32 %v193, 4294901760
      %962 = vmatmul.mubr.f32.gmra.mrb[0].mxu0 %v961
      %v963 = vpop.f32.mrb[0].mxu0
      %v964 = vadd.f32 %v847, %v963
      %v965 = vpop.f32.mrb[0].mxu0
      %966 = vmatprep.mubr.f32.mxu0 0.0
      %v967 = vand.u32 %v196, 4294901760
      %968 = vmatmul.mubr.f32.gmra.mrb[0].mxu0 %v967
      %v969 = vpop.f32.mrb[0].mxu0
      %v970 = vadd.f32 %v853, %v969
      %v971 = vpop.f32.mrb[0].mxu0
      %972 = vmatprep.mubr.f32.mxu0 0.0
      %v973 = vand.u32 %v199, 4294901760
      %974 = vmatmul.mubr.f32.gmra.mrb[0].mxu0 %v973
      %v975 = vpop.f32.mrb[0].mxu0
      %v976 = vadd.f32 %v859, %v975
      %v977 = vpop.f32.mrb[0].mxu0
      %978 = vmatprep.mubr.f32.mxu0 0.0
      %v979 = vand.u32 %v202, 4294901760
      %980 = vmatmul.mubr.f32.gmra.mrb[0].mxu0 %v979
      %v981 = vpop.f32.mrb[0].mxu0
      %v982 = vadd.f32 %v865, %v981
      %v983 = vpop.f32.mrb[0].mxu0
      %984 = vmatprep.mubr.f32.mxu0 0.0
      %v985 = vand.u32 %v205, 4294901760
      %986 = vmatmul.mubr.f32.gmra.mrb[0].mxu0 %v985
      %v987 = vpop.f32.mrb[0].mxu0
      %v988 = vadd.f32 %v871, %v987
      %v989 = vpop.f32.mrb[0].mxu0
      %990 = vmatprep.mubr.f32.mxu0 0.0
      %v991 = vand.u32 %v208, 4294901760
      %992 = vmatmul.mubr.f32.gmra.mrb[0].mxu0 %v991
      %v993 = vpop.f32.mrb[0].mxu0
      %v994 = vadd.f32 %v877, %v993
      %v995 = vpop.f32.mrb[0].mxu0
      %996 = vmatprep.mubr.f32.mxu0 0.0
      %v997 = vand.u32 %v211, 4294901760
      %998 = vmatmul.mubr.f32.gmra.mrb[0].mxu0 %v997
      %v999 = vpop.f32.mrb[0].mxu0
      %v1000 = vadd.f32 %v883, %v999
      %v1001 = vpop.f32.mrb[0].mxu0
      %1002 = vdwg.mxu0
      %1011 = vrot.lane.b32.xlu0 %v958, 118
      %v1012 = vpop.permute.xlu0 %1011
      %1013 = vrot.lane.b32.xlu0 %v964, 118
      %v1014 = vpop.permute.xlu0 %1013
      %1015 = vrot.lane.b32.xlu0 %v970, 118
      %v1016 = vpop.permute.xlu0 %1015
      %1017 = vrot.lane.b32.xlu0 %v976, 118
      %v1018 = vpop.permute.xlu0 %1017
      %1019 = vrot.lane.b32.xlu0 %v982, 118
      %v1020 = vpop.permute.xlu0 %1019
      %1021 = vrot.lane.b32.xlu0 %v988, 118
      %v1022 = vpop.permute.xlu0 %1021
      %1023 = vrot.lane.b32.xlu0 %v994, 118
      %v1024 = vpop.permute.xlu0 %1023
      %1025 = vrot.lane.b32.xlu0 %v1000, 118
      %v1026 = vpop.permute.xlu0 %1025
      %v1035 = vmax.f32 %v958, %v1012
      %v1036 = vmax.f32 %v964, %v1014
      %v1037 = vmax.f32 %v970, %v1016
      %v1038 = vmax.f32 %v976, %v1018
      %v1039 = vmax.f32 %v982, %v1020
      %v1040 = vmax.f32 %v988, %v1022
      %v1041 = vmax.f32 %v994, %v1024
      %v1042 = vmax.f32 %v1000, %v1026
      %v1043 = vstv %s175
      %v1044 = vadd.f32 %v1035, %v1043
      %v1045 = vadd.f32 %v1036, %v1043
      %v1046 = vadd.f32 %v1037, %v1043
      %v1047 = vadd.f32 %v1038, %v1043
      %v1048 = vadd.f32 %v1039, %v1043
      %v1049 = vadd.f32 %v1040, %v1043
      %v1050 = vadd.f32 %v1041, %v1043
      %v1051 = vadd.f32 %v1042, %v1043
      %v1052 = vmax.f32 %v1044, 0.0
      %v1053 = vmax.f32 %v1045, 0.0
      %v1054 = vmax.f32 %v1046, 0.0
      %v1055 = vmax.f32 %v1047, 0.0
      %v1056 = vmax.f32 %v1048, 0.0
      %v1057 = vmax.f32 %v1049, 0.0
      %v1058 = vmax.f32 %v1050, 0.0
      %v1059 = vmax.f32 %v1051, 0.0
      %vm1060 = vcmask 80896
      %1061 = vst.msk [vmem:[%s173] sm:$0xff] %vm1060, %v1052
      %1062 = vst.msk [vmem:[%s173 + $0x8] sm:$0xff] %vm1060, %v1053
      %1063 = vst.msk [vmem:[%s173 + $0x10] sm:$0xff] %vm1060, %v1054
      %1064 = vst.msk [vmem:[%s173 + $0x18] sm:$0xff] %vm1060, %v1055
      %1065 = vst.msk [vmem:[%s173 + $0x20] sm:$0xff] %vm1060, %v1056
      %1066 = vst.msk [vmem:[%s173 + $0x28] sm:$0xff] %vm1060, %v1057
      %1067 = vst.msk [vmem:[%s173 + $0x30] sm:$0xff] %vm1060, %v1058
      %1068 = vst.msk [vmem:[%s173 + $0x38] sm:$0xff] %vm1060, %v1059
      %s1069 = smul.u32 8, %s15
      %p1070 = scmp.lt.s32.totalorder %s1069, 15
      %s1071 = scalar_select %p1070, %s1069, 15
      %s1072 = smul.addr %s1071, 8
      %s1073 = scalar_lea.vmem %s3, %s1072
      // Predicated region
      $region33: #{basic_cnn_forward_batched.1} parent=31 // pred_check
        %p1074 = pneg %p101
      $region34: #{basic_cnn_forward_batched.1} parent=31 // pred_check_branch
        %1076 = sbr.rel (%p1074) target = $region36
      $region35: #{basic_cnn_forward_batched.1} parent=31 // pred_region
        %s1077 = smul.u32 8, %s15
      $region36: #{basic_cnn_forward_batched.1} parent=31 // pred_fallthru
        _
    $region32: #{basic_cnn_forward_batched.1} parent=5 // pred_fallthru
      _
    %p1078 = scmp.le.s32.totalorder 2, %s10
    // Predicated region
    $region37: #{basic_cnn_forward_batched.1} parent=5 // pred_check
      %p1079 = pneg %p1078
    $region38: #{basic_cnn_forward_batched.1} parent=5 // pred_check_branch
      %1081 = sbr.rel (%p1079) target = $region40
    $region39: #{basic_cnn_forward_batched.1} parent=5 // pred_region
      %s1082 = ssub.s32 %s10, 2
      // Predicated region
      $region41: #{basic_cnn_forward_batched.1} parent=39 // pred_check
        %p1083 = pneg %p107
      $region42: #{basic_cnn_forward_batched.1} parent=39 // pred_check_branch
        %1085 = sbr.rel (%p1083) target = $region44
      $region43: #{basic_cnn_forward_batched.1} parent=39 // pred_region
        %s1086 = smul.u32 8, %s16
        %p1087 = scmp.lt.s32.totalorder %s1086, 15
        %s1088 = scalar_select %p1087, %s1086, 15
        %s1089 = smul.addr %s1088, 8
        %s1090 = scalar_lea.vmem %s3, %s1089
      $region44: #{basic_cnn_forward_batched.1} parent=39 // pred_fallthru
        _
    $region40: #{basic_cnn_forward_batched.1} parent=5 // pred_fallthru
      _
  $region6: #{basic_cnn_forward_batched.1} parent=0 // loop_footer
    %s14 = sadd.s32 1, %s10
  $region7: #{basic_cnn_forward_batched.1} parent=0 // loop_footer_branch
    %9 = sbr.rel target = $region3
  $region8: #{basic_cnn_forward_batched.1} parent=0 // loop_exit
    _

</llo_original>
